<compile_context>
chip_gen: v7x
topology: tpu7x:2x2x1
jax: 0.10.0
libtpu: 0.0.40
codegen_flags: <defaults>
</compile_context>

<pallas_src>
import jax
import jax.numpy as jnp
from jax import lax
from jax.experimental import pallas as pl
from jax.experimental.pallas import tpu as pltpu


def _pick_c_tile(B, C, T, itemsize, budget_bytes=4 * 1024 * 1024):
    """Largest channel tile that (a) divides C, (b) is a multiple of the native sublane packing
    (8 for 4-byte, 16 for bf16, 32 for 1-byte dtypes -- keeps packed vregs dense), and
    (c) keeps the (c_tile, T) input block under ~4 MiB so double-buffered in/out plus the
    in-kernel temporaries stay inside a 32 MiB scoped-VMEM budget on v5e/v6e/v7x."""
    step = {4: 8, 2: 16, 1: 32}.get(itemsize, 8)
    cands = [d for d in range(step, C + 1, step) if C % d == 0] or [C]
    fitting = [d for d in cands if d * T * itemsize <= budget_bytes] or [min(cands)]
    # TODO(synk): if even the smallest channel tile exceeds the budget (huge T), add a halo'd
    # time-axis split instead of falling back to an oversized block.
    c_tile = max(fitting)
    # v7x megacore: prefer >= 2 parallel grid items so both TensorCores get work.
    if B * (C // c_tile) < 2:
        split = [d for d in fitting if C // d >= 2]
        if split:
            c_tile = max(split)
    return c_tile


def _make_kernel(kernel_size, stride, padding, c_tile, T, t_out):
    W_y = t_out * stride                 # full (stride-1) resolution width we need
    W_xp = W_y + kernel_size - 1         # -inf-padded input width
    pad_l = padding
    pad_r = W_xp - padding - T
    assert pad_r >= 0, "internal padding math error"

    def kernel(x_ref, m_ref, o_ref):
        xv = x_ref[...]                                              # (c_tile, T), input dtype
        # Build the pool-padded row once (single concat); max in input dtype is exact.
        parts = []
        if pad_l:
            parts.append(jnp.full((c_tile, pad_l), -jnp.inf, xv.dtype))
        parts.append(xv)
        if pad_r:
            parts.append(jnp.full((c_tile, pad_r), -jnp.inf, xv.dtype))
        xp = parts[0] if len(parts) == 1 else jnp.concatenate(parts, axis=-1)  # (c_tile, W_xp)

        # Sliding-window max at full temporal resolution: k-1 shifted maxima via static
        # lane-offset slices (XLU/VPU work, free slots in an HBM-bound kernel).
        acc = xp[:, 0:W_y]
        for d in range(1, kernel_size):
            acc = jnp.maximum(acc, xp[:, d:d + W_y])

        # Single strided down-select of the *result*: one lane de-interleave total,
        # instead of one per stride phase of the input.
        if stride > 1:
            acc = acc.reshape(c_tile, t_out, stride)[:, :, 0]        # (c_tile, t_out)

        m = m_ref[...]                                               # (1, t_out), broadcasts over C
        # where() instead of acc*m: identical for finite x, avoids NaN if x was -inf-masked.
        o_ref[...] = jnp.where(m != 0, acc, jnp.zeros_like(acc)).astype(o_ref.dtype)

    return kernel


def temporal_maxer(x, mask, *, kernel_size: int, stride: int, padding: int):
    """Pallas implementation of TemporalMaxer.forward.

    x:    (B, C, T) float
    mask: (B, 1, T) bool
    returns (out: (B, C, T_out) float, out_mask: (B, 1, T_out) bool)
    """
    B, C, T = x.shape
    t_out = (T + 2 * padding - kernel_size) // stride + 1

    # glue: out_mask = F.interpolate(mask, size=T//stride, mode='nearest') -- tiny, stays in XLA
    if stride > 1:
        t_mask = T // stride
        idx = (jnp.arange(t_mask) * T) // t_mask                    # legacy 'nearest' index rule
        out_mask_f = jnp.take(mask.astype(x.dtype), idx, axis=-1)
    else:
        t_mask = T
        out_mask_f = mask.astype(x.dtype)
    assert t_mask == t_out, (
        "TemporalMaxer needs pooled length == interpolated-mask length "
        f"(got pool={t_out}, mask={t_mask}); same restriction as the PyTorch broadcast.")

    itemsize = jnp.dtype(x.dtype).itemsize
    c_tile = _pick_c_tile(B, C, T, itemsize)
    grid = (B, C // c_tile)

    bytes_accessed = (B * C * T + B * C * t_out + B * t_out) * itemsize
    cost = pl.CostEstimate(
        flops=int(B * C * t_out * stride * max(kernel_size - 1, 1) + B * C * t_out),
        transcendentals=0,
        bytes_accessed=int(bytes_accessed))

    out = pl.pallas_call(
        _make_kernel(kernel_size, stride, padding, c_tile, T, t_out),
        out_shape=jax.ShapeDtypeStruct((B, C, t_out), x.dtype),
        grid=grid,
        in_specs=[
            pl.BlockSpec((pl.Squeezed(), c_tile, T), lambda b, c: (b, c, 0)),
            pl.BlockSpec((pl.Squeezed(), 1, t_out), lambda b, c: (b, 0, 0)),
        ],
        out_specs=pl.BlockSpec((pl.Squeezed(), c_tile, t_out), lambda b, c: (b, c, 0)),
        compiler_params=pltpu.CompilerParams(
            dimension_semantics=("parallel", "parallel"),
            vmem_limit_bytes=32 * 1024 * 1024),
        cost_estimate=cost,
    )(x, out_mask_f)

    return out, out_mask_f.astype(bool)


if __name__ == "__main__":
    key = jax.random.PRNGKey(0)
    kx, _ = jax.random.split(key)

    # TemporalMaxer has no learned parameters; typical config kernel_size=3, stride=2, padding=1.
    B, C, T = 2, 4, 16
    kernel_size, stride, padding = 3, 2, 1

    x = jax.random.normal(kx, (B, C, T), dtype=jnp.float32)
    lengths = jnp.array([16, 10], dtype=jnp.int32)
    mask = jnp.arange(T)[None, None, :] < lengths[:, None, None]    # (B, 1, T) bool

    out, out_mask = temporal_maxer(
        x, mask, kernel_size=kernel_size, stride=stride, padding=padding
    )
    out = jax.block_until_ready(out)
    out_mask = jax.block_until_ready(out_mask)

    # pure-JAX reference (MaxPool1d + nearest interpolate + multiply)
    ref_pool = lax.reduce_window(
        x, -jnp.inf, lax.max,
        (1, 1, kernel_size), (1, 1, stride),
        [(0, 0), (0, 0), (padding, padding)],
    )
    t_mask = T // stride
    idx = (jnp.arange(t_mask) * T) // t_mask
    ref_mask_f = jnp.take(mask.astype(x.dtype), idx, axis=-1)
    ref_out = ref_pool * ref_mask_f

    assert out.shape == (B, C, t_mask) and out_mask.shape == (B, 1, t_mask)
    assert jnp.allclose(out, ref_out), "kernel output mismatch vs reference"
    assert jnp.array_equal(out_mask, ref_mask_f.astype(bool)), "mask mismatch vs reference"

    print("KERNEL_OK")
</pallas_src>

<mosaic_0001>
module attributes {stable_mosaic.version = 11 : i64} {
  func.func @kernel(%arg0: i32, %arg1: i32, %arg2: memref<1x4x16xf32, #tpu.memory_space<vmem>>, %arg3: memref<1x1x8xf32, #tpu.memory_space<vmem>>, %arg4: memref<1x4x8xf32, #tpu.memory_space<vmem>>) attributes {dimension_semantics = [#tpu.dimension_semantics<parallel>, #tpu.dimension_semantics<parallel>], iteration_bounds = array<i64: 2, 1>, scalar_prefetch = 0 : i64, scratch_operands = 0 : i64, tpu.core_type = #tpu.core_type<tc>, window_params = [{transform_indices = @transform_0, window_bounds = array<i64: 1, 4, 16>}, {transform_indices = @transform_1, window_bounds = array<i64: 1, 1, 8>}, {transform_indices = @transform_2, window_bounds = array<i64: 1, 4, 8>}]} {
    %c0 = arith.constant 0 : index
    %c0_0 = arith.constant 0 : index
    %c0_1 = arith.constant 0 : index
    %0 = vector.load %arg2[%c0, %c0_0, %c0_1] : memref<1x4x16xf32, #tpu.memory_space<vmem>>, vector<1x4x16xf32>
    %1 = vector.shape_cast %0 : vector<1x4x16xf32> to vector<4x16xf32>
    %cst = arith.constant 0xFF800000 : f32
    %2 = vector.broadcast %cst : f32 to vector<4x1xf32>
    %cst_2 = arith.constant 0xFF800000 : f32
    %3 = vector.broadcast %cst_2 : f32 to vector<4x1xf32>
    %4 = tpu.concatenate %2, %1, %3 in 1 : vector<4x1xf32>, vector<4x16xf32>, vector<4x1xf32> -> vector<4x18xf32>
    %5 = vector.extract_strided_slice %4 {offsets = [0, 0], sizes = [4, 16], strides = [1, 1]} : vector<4x18xf32> to vector<4x16xf32>
    %6 = vector.extract_strided_slice %4 {offsets = [0, 1], sizes = [4, 16], strides = [1, 1]} : vector<4x18xf32> to vector<4x16xf32>
    %7 = arith.maximumf %5, %6 : vector<4x16xf32>
    %8 = vector.extract_strided_slice %4 {offsets = [0, 2], sizes = [4, 16], strides = [1, 1]} : vector<4x18xf32> to vector<4x16xf32>
    %9 = arith.maximumf %7, %8 : vector<4x16xf32>
    %10 = vector.shape_cast %9 : vector<4x16xf32> to vector<4x8x2xf32>
    %11 = vector.extract_strided_slice %10 {offsets = [0, 0, 0], sizes = [4, 8, 1], strides = [1, 1, 1]} : vector<4x8x2xf32> to vector<4x8x1xf32>
    %12 = vector.shape_cast %11 : vector<4x8x1xf32> to vector<4x8xf32>
    %c0_3 = arith.constant 0 : index
    %c0_4 = arith.constant 0 : index
    %c0_5 = arith.constant 0 : index
    %13 = vector.load %arg3[%c0_3, %c0_4, %c0_5] : memref<1x1x8xf32, #tpu.memory_space<vmem>>, vector<1x1x8xf32>
    %14 = vector.shape_cast %13 : vector<1x1x8xf32> to vector<1x8xf32>
    %cst_6 = arith.constant 0.000000e+00 : f32
    %15 = vector.broadcast %cst_6 : f32 to vector<1x8xf32>
    %16 = arith.cmpf one, %14, %15 : vector<1x8xf32>
    %cst_7 = arith.constant 0.000000e+00 : f32
    %17 = vector.broadcast %cst_7 : f32 to vector<4x8xf32>
    %18 = vector.shape_cast %16 : vector<1x8xi1> to vector<1x8xi1>
    %19 = vector.broadcast %18 : vector<1x8xi1> to vector<4x8xi1>
    %20 = arith.select %19, %12, %17 : vector<4x8xi1>, vector<4x8xf32>
    %c0_8 = arith.constant 0 : index
    %c0_9 = arith.constant 0 : index
    %c0_10 = arith.constant 0 : index
    %21 = vector.load %arg4[%c0_8, %c0_9, %c0_10] : memref<1x4x8xf32, #tpu.memory_space<vmem>>, vector<1x4x8xf32>
    %22 = vector.shape_cast %21 : vector<1x4x8xf32> to vector<4x8xf32>
    %23 = vector.shape_cast %20 : vector<4x8xf32> to vector<1x4x8xf32>
    tpu.vector_store %arg4[%c0_8, %c0_9, %c0_10], %23 {strides = array<i32>} : memref<1x4x8xf32, #tpu.memory_space<vmem>>, vector<1x4x8xf32>,
    return
  }
  func.func @transform_0(%arg0: i32, %arg1: i32) -> (i32, i32, i32) {
    %c0_i32 = arith.constant 0 : i32
    %c0_i32_0 = arith.constant 0 : i32
    return %arg0, %arg1, %c0_i32 : i32, i32, i32
  }
  func.func @transform_1(%arg0: i32, %arg1: i32) -> (i32, i32, i32) {
    %c0_i32 = arith.constant 0 : i32
    %c0_i32_0 = arith.constant 0 : i32
    %c0_i32_1 = arith.constant 0 : i32
    return %arg0, %c0_i32, %c0_i32_0 : i32, i32, i32
  }
  func.func @transform_2(%arg0: i32, %arg1: i32) -> (i32, i32, i32) {
    %c0_i32 = arith.constant 0 : i32
    %c0_i32_0 = arith.constant 0 : i32
    return %arg0, %arg1, %c0_i32 : i32, i32, i32
  }
}

</mosaic_0001>

<llo_original>
// kernel: tpu_custom_call.1
$region0: #{tpu_custom_call.1}
  #allocation0 [shape = 'u32[]', space=smem, size = 0x4, offset = 0x4, fixed_abs, tag = 'smem constant byte address 0x4 - core index']
  #allocation1 [shape = 'u32[144,128]{1,0:T(1,128)}', space=vmem, size = 0x12000, scoped, tag = 'internal scratch']
  %s0 = inlined_call_operand.hbm [shape: f32[2,4,16], index: 0, kind: input, shape index: {}]
  %s1 = inlined_call_operand.vmem [shape: f32[2,1,8], index: 1, kind: input, shape index: {}]
  %s2 = inlined_call_operand.hbm [shape: f32[2,4,8], index: 2, kind: output, shape index: {}]
  %s3 = sld [smem:[#allocation0]]
  $region45: #{tpu_custom_call.1} parent=0
    _
  %s5 = ssub.s32 1, %s3
  %s6 = scalar_select 0, %s5, %s3
  $region1: #{tpu_custom_call.1} parent=0
    #allocation2 [shape = 'u8[4096]{0}', space=vmem, size = 0x1000, scoped, tag = 'input window, operand 0']
    #allocation3 [shape = 's32[2]{0}', space=sflag, size = 0x8, scoped, tag = 'scoped memory for tpu_custom_call.1']
    #allocation4 [shape = 's32[2]{0}', space=sflag, size = 0x8, scoped, tag = 'scoped memory for tpu_custom_call.1']
    #allocation5 [shape = 'u8[4096]{0}', space=vmem, size = 0x1000, scoped, tag = 'output window, operand 0']
    %7 = vsyncpa [#allocation3], 0
    %s8 = scalar_lea.sflag [#allocation3], 1
    %9 = vsyncpa %s8, 0
    %10 = vsyncpa [#allocation4], 0
    %s11 = scalar_lea.sflag [#allocation4], 1
    %12 = vsyncpa %s11, 0
    loop: start=0, step=1, limit=4
    $region2: #{tpu_custom_call.1} parent=1 // loop_pre_header
      _
    $region3: #{tpu_custom_call.1} parent=1 // loop_header
      %s14 = sphi 0, %s18
      %p15 = scmp.ge.s32.totalorder %s14, 4
      %s21 = sphi 0, %s33
      %s22 = sphi 0, %s29
      %s23 = sphi 0, %s21
      %s24 = sphi 0, %s22
      %s25 = sphi 0, %s23
      %s26 = sphi 0, %s24
      %s38 = sphi 0, %s40
      %s41 = sphi 0, %s38
      %s42 = sphi 0, %s41
      %s58 = sphi 0, %s42
      %s64 = sphi 0, %s66
      %s67 = sphi 0, %s64
      %s68 = sphi 0, %s67
      %s84 = sphi 0, %s68
      %s92 = sphi 0, %s94
      %s95 = sphi 0, %s92
      %s96 = sphi 0, %s95
      %s112 = sphi 0, %s96
    $region4: #{tpu_custom_call.1} parent=1 // loop_header_branch
      %17 = sbr.rel (%p15) target = $region8
    $region5: #{tpu_custom_call.1} parent=1 // loop_body
      %s19 = ssub.s32 %s14, 1
      %s20 = ssub.s32 %s14, 2
      %s27 = sadd.s32 1, %s22
      %p28 = scmp.ge.s32.totalorder %s27, 1
      %s29 = scalar_select %p28, 0, %s27
      %s30 = sadd.s32 1, %s21
      %s31 = scalar_select %p28, %s30, %s21
      %p32 = scmp.ge.s32.totalorder %s31, 2
      %s33 = scalar_select %p32, 0, %s31
      %s34 = ssub.s32 %s21, %s33
      %s35 = ssub.s32 %s22, %s29
      %s36 = sor.u32 %s34, %s35
      %p37 = scmp.eq.s32.totalorder %s36, 0
      %s39 = sadd.s32 %s38, 1
      %s40 = scalar_select %p37, %s38, %s39
      %p43 = pneg %p37
      %p44 = scmp.eq.s32.totalorder %s14, 1
      %p45 = por %p43, %p44
      %p46 = scmp.ne.s32.totalorder %s38, %s41
      %p47 = scmp.eq.s32.totalorder %s14, 0
      %p48 = por %p46, %p47
      %p49 = scmp.ne.s32.totalorder %s38, %s41
      %p50 = scmp.eq.s32.totalorder %s19, 1
      %p51 = por %p49, %p50
      %p52 = scmp.ne.s32.totalorder %s41, %s42
      %p53 = scmp.eq.s32.totalorder %s19, 0
      %p54 = por %p52, %p53
      %p55 = scmp.ne.s32.totalorder %s41, %s42
      %p56 = scmp.eq.s32.totalorder %s20, 1
      %p57 = por %p55, %p56
      %p59 = scmp.ne.s32.totalorder %s42, %s58
      %p60 = scmp.eq.s32.totalorder %s20, 0
      %p61 = por %p59, %p60
      %s62 = ssub.s32 %s21, %s33
      %p63 = scmp.eq.s32.totalorder %s62, 0
      %s65 = sadd.s32 %s64, 1
      %s66 = scalar_select %p63, %s64, %s65
      %p69 = pneg %p63
      %p70 = scmp.eq.s32.totalorder %s14, 1
      %p71 = por %p69, %p70
      %p72 = scmp.ne.s32.totalorder %s64, %s67
      %p73 = scmp.eq.s32.totalorder %s14, 0
      %p74 = por %p72, %p73
      %p75 = scmp.ne.s32.totalorder %s64, %s67
      %p76 = scmp.eq.s32.totalorder %s19, 1
      %p77 = por %p75, %p76
      %p78 = scmp.ne.s32.totalorder %s67, %s68
      %p79 = scmp.eq.s32.totalorder %s19, 0
      %p80 = por %p78, %p79
      %p81 = scmp.ne.s32.totalorder %s67, %s68
      %p82 = scmp.eq.s32.totalorder %s20, 1
      %p83 = por %p81, %p82
      %p85 = scmp.ne.s32.totalorder %s68, %s84
      %p86 = scmp.eq.s32.totalorder %s20, 0
      %p87 = por %p85, %p86
      %s88 = ssub.s32 %s21, %s33
      %s89 = ssub.s32 %s22, %s29
      %s90 = sor.u32 %s88, %s89
      %p91 = scmp.eq.s32.totalorder %s90, 0
      %s93 = sadd.s32 %s92, 1
      %s94 = scalar_select %p91, %s92, %s93
      %p97 = pneg %p91
      %p98 = scmp.eq.s32.totalorder %s14, 1
      %p99 = por %p97, %p98
      %p100 = scmp.ne.s32.totalorder %s92, %s95
      %p101 = scmp.eq.s32.totalorder %s14, 0
      %p102 = por %p100, %p101
      %p103 = scmp.ne.s32.totalorder %s92, %s95
      %p104 = scmp.eq.s32.totalorder %s19, 1
      %p105 = por %p103, %p104
      %p106 = scmp.ne.s32.totalorder %s95, %s96
      %p107 = scmp.eq.s32.totalorder %s19, 0
      %p108 = por %p106, %p107
      %p109 = scmp.ne.s32.totalorder %s95, %s96
      %p110 = scmp.eq.s32.totalorder %s20, 1
      %p111 = por %p109, %p110
      %p113 = scmp.ne.s32.totalorder %s96, %s112
      %p114 = scmp.eq.s32.totalorder %s20, 0
      %p115 = por %p113, %p114
      %p116 = scmp.le.s32.totalorder 1, %s14
      %p117 = scmp.lt.s32.totalorder %s14, 3
      %p118 = pnand %p116, %p117
      %p119 = pneg %p118
      // Predicated region
      $region9: #{tpu_custom_call.1} parent=5 // pred_check
        _
      $region10: #{tpu_custom_call.1} parent=5 // pred_check_branch
        %121 = sbr.rel (%p118) target = $region12
      $region11: #{tpu_custom_call.1} parent=5 // pred_region
        %s122 = ssub.s32 %s14, 1
      $region12: #{tpu_custom_call.1} parent=5 // pred_fallthru
        _
      %p123 = scmp.lt.s32.totalorder %s14, 2
      // Predicated region
      $region13: #{tpu_custom_call.1} parent=5 // pred_check
        %p124 = pneg %p123
      $region14: #{tpu_custom_call.1} parent=5 // pred_check_branch
        %126 = sbr.rel (%p124) target = $region16
      $region15: #{tpu_custom_call.1} parent=5 // pred_region
        // Predicated region
        $region17: #{tpu_custom_call.1} parent=15 // pred_check
          %p127 = pneg %p48
        $region18: #{tpu_custom_call.1} parent=15 // pred_check_branch
          %129 = sbr.rel (%p127) target = $region20
        $region19: #{tpu_custom_call.1} parent=15 // pred_region
          %s130 = sand.u32 %s38, 1
          %s131 = scalar_lea.sflag [#allocation3], %s130
          %s132 = sand.u32 %s38, 1
          %s133 = smul.addr %s132, 4
          %s134 = scalar_lea.vmem [#allocation2], %s133
          %s136 = ssub.s32 64, 64
          %137 = vsyncadd %s131, %s136
          %s138 = sadd.s32 %s22, %s21
          %s139 = smul.addr %s138, 64
          %s140 = scalar_lea.hbm %s0, %s139
          %s142 = sshll.u32 %s134, 4
          %s143 = int_to_ptr.vmem [resolvable:$true] %s142
          %145 = dma.hbm_to_vmem [thread:$0]  %s140, 64, %s143, %s131
        $region20: #{tpu_custom_call.1} parent=15 // pred_fallthru
          _
        // Predicated region
        $region21: #{tpu_custom_call.1} parent=15 // pred_check
          %p146 = pneg %p74
        $region22: #{tpu_custom_call.1} parent=15 // pred_check_branch
          %148 = sbr.rel (%p146) target = $region24
        $region23: #{tpu_custom_call.1} parent=15 // pred_region
          %p149 = scmp.lt.s32.totalorder %s21, 1
          %s150 = scalar_select %p149, %s21, 1
          %s151 = scalar_lea.vmem %s1, %s150
        $region24: #{tpu_custom_call.1} parent=15 // pred_fallthru
          _
      $region16: #{tpu_custom_call.1} parent=5 // pred_fallthru
        _
      %p152 = scmp.le.s32.totalorder 1, %s14
      %p153 = scmp.lt.s32.totalorder %s14, 3
      %p154 = pnand %p152, %p153
      %p155 = pneg %p154
      // Predicated region
      $region25: #{tpu_custom_call.1} parent=5 // pred_check
        _
      $region26: #{tpu_custom_call.1} parent=5 // pred_check_branch
        %157 = sbr.rel (%p154) target = $region28
      $region27: #{tpu_custom_call.1} parent=5 // pred_region
        %s158 = ssub.s32 %s14, 1
        %s159 = sand.u32 %s41, 1
        %s160 = scalar_lea.sflag [#allocation3], %s159
        %s161 = sand.u32 %s41, 1
        %s162 = smul.addr %s161, 4
        %s163 = scalar_lea.vmem [#allocation2], %s162
        // Predicated region
        $region29: #{tpu_custom_call.1} parent=27 // pred_check
          %p164 = pneg %p54
        $region30: #{tpu_custom_call.1} parent=27 // pred_check_branch
          %166 = sbr.rel (%p164) target = $region32
        $region31: #{tpu_custom_call.1} parent=27 // pred_region
          %167 = dma.done %s160, 64
        $region32: #{tpu_custom_call.1} parent=27 // pred_fallthru
          _
        %s168 = sand.u32 %s41, 1
        %s169 = scalar_lea.sflag [#allocation3], %s168
        %s170 = sand.u32 %s41, 1
        %s171 = smul.addr %s170, 4
        %s172 = scalar_lea.vmem [#allocation2], %s171
        %p173 = pneg %p54
        %p174 = pneg %p51
        %p175 = scmp.lt.s32.totalorder %s23, 1
        %s176 = scalar_select %p175, %s23, 1
        %s177 = scalar_lea.vmem %s1, %s176
        %p178 = pneg %p80
        %p179 = pneg %p77
        %p180 = pneg %p108
        %p181 = pneg %p105
        %s182 = sand.u32 %s95, 1
        %s183 = scalar_lea.sflag [#allocation4], %s182
        %s184 = sand.u32 %s95, 1
        %s185 = smul.addr %s184, 4
        %s186 = scalar_lea.vmem [#allocation5], %s185
        %p187 = scmp.lt.s32.totalorder %s23, 1
        %s188 = scalar_select %p187, %s23, 1
        %s189 = scalar_lea.vmem %s1, %s188
        %v190 = vld [vmem:[%s163] sm:$0xf]
        %192 = vrot.lane.b32.xlu0 %v190, 1
        %v193 = vpop.permute.xlu0 %192
        %vm195 = vcmask 7168
        %v196 = vsel %vm195, -inf, %v193
        %vm197 = vcmask 138240
        %v198 = vsel %vm197, %v196, -inf
        %200 = vrot.lane.b32.xlu0 %v198, 127
        %v201 = vpop.permute.xlu0 %200
        %v203 = vmax.f32 %v198, %v201
        %204 = vrot.lane.b32.xlu0 %v198, 126
        %v205 = vpop.permute.xlu0 %204
        %v207 = vmax.f32 %v203, %v205
        %209 = vrot.lane.b32.xlu0 %v207, 126
        %v210 = vpop.permute.xlu0 %209
        %212 = vrot.lane.b32.xlu0 %v207, 124
        %v213 = vpop.permute.xlu0 %212
        %215 = vrot.lane.b32.xlu0 %v207, 122
        %v216 = vpop.permute.xlu0 %215
        %218 = vrot.lane.b32.xlu0 %v207, 120
        %v219 = vpop.permute.xlu0 %218
        %221 = vrot.lane.b32.xlu0 %v207, 118
        %v222 = vpop.permute.xlu0 %221
        %224 = vrot.lane.b32.xlu0 %v207, 116
        %v225 = vpop.permute.xlu0 %224
        %227 = vrot.lane.b32.xlu0 %v207, 114
        %v228 = vpop.permute.xlu0 %227
        %v230 = vcombine.low %v207, %v213
        %v232 = vunpack.c.l.s4 1983009808
        %v233 = vunpack.c.0.s8 %v232
        %v234 = vlaneseq
        %v235 = vshrl.u32 %v234, 7
        %v236 = vsub.s32 %v233, %v235
        %v237 = vrot.slane %v230, %v236
        %v238 = vcombine.low %v210, %v216
        %v240 = vunpack.c.l.s4 1983009808
        %v241 = vunpack.c.0.s8 %v240
        %v242 = vlaneseq
        %v243 = vshrl.u32 %v242, 7
        %v244 = vsub.s32 %v241, %v243
        %v245 = vrot.slane %v238, %v244
        %v246 = vcombine.low %v219, %v225
        %v248 = vunpack.c.l.s4 1983009808
        %v249 = vunpack.c.0.s8 %v248
        %v250 = vlaneseq
        %v251 = vshrl.u32 %v250, 7
        %v252 = vsub.s32 %v249, %v251
        %v253 = vrot.slane %v246, %v252
        %v254 = vcombine.low %v222, %v228
        %v256 = vunpack.c.l.s4 1983009808
        %v257 = vunpack.c.0.s8 %v256
        %v258 = vlaneseq
        %v259 = vshrl.u32 %v258, 7
        %v260 = vsub.s32 %v257, %v259
        %v261 = vrot.slane %v254, %v260
        %v262 = vcombine.low %v237, %v245
        %v263 = vcombine.high %v237, %v245
        %v265 = vunpack.c.l.s4 1934713408
        %v266 = vunpack.c.0.s8 %v265
        %v267 = vlaneseq
        %v268 = vshrl.u32 %v267, 7
        %v269 = vsub.s32 %v266, %v268
        %v270 = vrot.slane %v262, %v269
        %v272 = vunpack.c.l.s4 1934713408
        %v273 = vunpack.c.0.s8 %v272
        %v274 = vlaneseq
        %v275 = vshrl.u32 %v274, 7
        %v276 = vsub.s32 %v273, %v275
        %v277 = vrot.slane %v263, %v276
        %v278 = vcombine.low %v253, %v261
        %v279 = vcombine.high %v253, %v261
        %v281 = vunpack.c.l.s4 1934713408
        %v282 = vunpack.c.0.s8 %v281
        %v283 = vlaneseq
        %v284 = vshrl.u32 %v283, 7
        %v285 = vsub.s32 %v282, %v284
        %v286 = vrot.slane %v278, %v285
        %v288 = vunpack.c.l.s4 1934713408
        %v289 = vunpack.c.0.s8 %v288
        %v290 = vlaneseq
        %v291 = vshrl.u32 %v290, 7
        %v292 = vsub.s32 %v289, %v291
        %v293 = vrot.slane %v279, %v292
        %v294 = vcombine.low %v270, %v286
        %v295 = vcombine.high %v270, %v286
        %v296 = vcombine.low %v277, %v293
        %v297 = vcombine.high %v277, %v293
        %v298 = vld [vmem:[%s189] sm:$0x1]
        %vm299 = vcmp.ne.f32.partialorder %v298, 0.0
        %v300 = vsel %vm299, 1, 0
        %v301 = vlaneseq
        %v302 = vshrl.u32 %v301, 7
        %v303 = vsub.s32 0, %v302
        %v304 = vrot.slane %v300, %v303
        %vm305 = vcmp.eq.s32.totalorder %v304, 1
        %310 = vset.pattern.permute.xlu0 0
        %311 = vperm.xlu0 %310, %v294
        %v312 = vpop.permute.xlu0 %311
        %313 = vset.pattern.permute.xlu0 0
        %314 = vperm.xlu0 %313, %v295
        %v315 = vpop.permute.xlu0 %314
        %316 = vset.pattern.permute.xlu0 0
        %317 = vperm.xlu0 %316, %v296
        %v318 = vpop.permute.xlu0 %317
        %319 = vset.pattern.permute.xlu0 0
        %320 = vperm.xlu0 %319, %v297
        %v321 = vpop.permute.xlu0 %320
        %v322 = vlaneseq
        %v323 = vand.u32 %v322, 127
        %v324 = vlaneseq
        %v325 = vshrl.u32 %v324, 7
        %v326 = vsub.s32 %v323, %v325
        %v327 = vrot.slane %v312, %v326
        %v328 = vlaneseq
        %v329 = vshrl.u32 %v328, 7
        %v330 = vsub.s32 %v323, %v329
        %v331 = vrot.slane %v315, %v330
        %v332 = vlaneseq
        %v333 = vshrl.u32 %v332, 7
        %v334 = vsub.s32 %v323, %v333
        %v335 = vrot.slane %v318, %v334
        %v336 = vlaneseq
        %v337 = vshrl.u32 %v336, 7
        %v338 = vsub.s32 %v323, %v337
        %v339 = vrot.slane %v321, %v338
        %vm340 = vcmask 1041409
        %v341 = vsel %vm340, %v331, %v327
        %vm342 = vcmask 1042434
        %v343 = vsel %vm342, %v335, %v341
        %vm344 = vcmask 1043459
        %v345 = vsel %vm344, %v339, %v343
        %v347 = vsel %vm305, %v345, 0.0
        %vm348 = vcmask 60416
        %349 = vst.msk [vmem:[%s186] sm:$0xf] %vm348, %v347
        %s350 = sand.u32 %s95, 1
        %s351 = scalar_lea.sflag [#allocation4], %s350
        %s352 = sand.u32 %s95, 1
        %s353 = smul.addr %s352, 4
        %s354 = scalar_lea.vmem [#allocation5], %s353
        // Predicated region
        $region33: #{tpu_custom_call.1} parent=27 // pred_check
          %p355 = pneg %p105
        $region34: #{tpu_custom_call.1} parent=27 // pred_check_branch
          %357 = sbr.rel (%p355) target = $region36
        $region35: #{tpu_custom_call.1} parent=27 // pred_region
          %s359 = ssub.s32 64, 64
          %360 = vsyncadd %s351, %s359
          %s361 = sadd.s32 %s24, %s23
          %s362 = smul.addr %s361, 64
          %s363 = scalar_lea.hbm %s2, %s362
          %s365 = sshll.u32 %s354, 4
          %s366 = int_to_ptr.vmem [resolvable:$true] %s365
          %368 = dma.vmem_to_hbm [thread:$0]  %s366, 64, %s363, %s351
        $region36: #{tpu_custom_call.1} parent=27 // pred_fallthru
          _
      $region28: #{tpu_custom_call.1} parent=5 // pred_fallthru
        _
      %p369 = scmp.le.s32.totalorder 2, %s14
      // Predicated region
      $region37: #{tpu_custom_call.1} parent=5 // pred_check
        %p370 = pneg %p369
      $region38: #{tpu_custom_call.1} parent=5 // pred_check_branch
        %372 = sbr.rel (%p370) target = $region40
      $region39: #{tpu_custom_call.1} parent=5 // pred_region
        %s373 = ssub.s32 %s14, 2
        // Predicated region
        $region41: #{tpu_custom_call.1} parent=39 // pred_check
          %p374 = pneg %p111
        $region42: #{tpu_custom_call.1} parent=39 // pred_check_branch
          %376 = sbr.rel (%p374) target = $region44
        $region43: #{tpu_custom_call.1} parent=39 // pred_region
          %s377 = sand.u32 %s96, 1
          %s378 = scalar_lea.sflag [#allocation4], %s377
          %s379 = sand.u32 %s96, 1
          %s380 = smul.addr %s379, 4
          %s381 = scalar_lea.vmem [#allocation5], %s380
          %382 = dma.done %s378, 64
        $region44: #{tpu_custom_call.1} parent=39 // pred_fallthru
          _
      $region40: #{tpu_custom_call.1} parent=5 // pred_fallthru
        _
    $region6: #{tpu_custom_call.1} parent=1 // loop_footer
      %s18 = sadd.s32 1, %s14
    $region7: #{tpu_custom_call.1} parent=1 // loop_footer_branch
      %13 = sbr.rel target = $region3
    $region8: #{tpu_custom_call.1} parent=1 // loop_exit
      _
    %383 = vsyncpa [#allocation3], 1
    %s384 = scalar_lea.sflag [#allocation3], 1
    %385 = vsyncpa %s384, 1
    %386 = vsyncpa [#allocation4], 1
    %s387 = scalar_lea.sflag [#allocation4], 1
    %388 = vsyncpa %s387, 1

</llo_original>
